<compile_context>
chip_gen: v7x
topology: tpu7x:2x2x1
jax: 0.10.0
libtpu: 0.0.40
codegen_flags: <defaults>
</compile_context>

<pallas_src>
import functools

import jax
import jax.numpy as jnp
from jax.experimental import pallas as pl
from jax.experimental.pallas import tpu as pltpu


def _conv_bn_relu_kernel(x_ref, w_ref, bias_ref, o_ref, *, H, KH, relu):
    # x_ref:    (1, Hp, Cpad)       padded image, lanes = (Wp*Cin) zero-padded to Cpad
    # w_ref:    (KH, Cpad, W*Cout)  block-Toeplitz weights with BN scale folded in (bf16)
    # bias_ref: (1, W*Cout)         BN bias tiled over W (f32)
    # o_ref:    (1, H, W*Cout)      lane-dense output (W*Cout is a multiple of 128 here)
    acc = jnp.zeros(o_ref.shape[1:], jnp.float32)   # (H, W*Cout) f32 accumulator
    # Only KH matmuls; kw and Cin are folded into one dense 128-wide contraction.
    for kh in range(KH):
        lhs = x_ref[0, pl.ds(kh, H), :]             # (H, Cpad): slice only along sublanes
        acc = acc + jnp.dot(lhs, w_ref[kh], preferred_element_type=jnp.float32)
    out = acc + bias_ref[...]
    if relu:
        out = jnp.maximum(out, 0.0)
    o_ref[0] = out.astype(o_ref.dtype)


def conv_bn_relu_pallas(x_nhwc, w_hwio, gamma, beta, running_mean, running_var,
                        *, eps=1e-5, relu=True, compute_dtype=jnp.bfloat16):
    """x_nhwc: (N, H, W, Cin) f32; w_hwio: (KH, KW, Cin, Cout) f32. Returns (N, H, W, Cout) f32."""
    N, H, W, Cin = x_nhwc.shape
    KH, KW, Cin_w, Cout = w_hwio.shape
    assert Cin_w == Cin
    # Module default: padding = kernel_size // 2 (matches SAME only for odd k, stride 1).
    ph, pw = KH // 2, KW // 2
    Hp, Wp = H + 2 * ph, W + 2 * pw

    # ---- Fuse BN into the weights + per-channel bias (fuse_conv_bn math) -------------
    std = jnp.sqrt(running_var + eps)
    scale = gamma / std
    w_scaled = (w_hwio * scale[None, None, None, :]).astype(compute_dtype)
    bias = (beta - running_mean * scale).astype(jnp.float32)

    # ---- Block-Toeplitz weights: (KH, Wp*Cin, W*Cout) ---------------------------------
    # w_toep[kh, (w+kw)*Cin + ci, w*Cout + co] = w_scaled[kh, kw, ci, co]
    p_idx = jnp.arange(Wp)
    w_idx = jnp.arange(W)
    kw_idx = p_idx[:, None] - w_idx[None, :]                       # (Wp, W)
    valid = (kw_idx >= 0) & (kw_idx < KW)
    gath = w_scaled[:, jnp.clip(kw_idx, 0, KW - 1)]                # (KH, Wp, W, Cin, Cout)
    gath = jnp.where(valid[None, :, :, None, None], gath, 0)
    w_toep = gath.transpose(0, 1, 3, 2, 4).reshape(KH, Wp * Cin, W * Cout)

    # Zero-pad the contraction dim to a lane multiple (dense, aligned MXU contraction).
    Cpad = ((Wp * Cin + 127) // 128) * 128
    w_toep = jnp.pad(w_toep, ((0, 0), (0, Cpad - Wp * Cin), (0, 0))).astype(compute_dtype)

    # ---- Input: spatial zero-pad, fold (W, Cin) onto lanes, pad lanes to Cpad ----------
    x_pad = jnp.pad(x_nhwc, ((0, 0), (ph, ph), (pw, pw), (0, 0)))
    x2d = x_pad.reshape(N, Hp, Wp * Cin)
    x2d = jnp.pad(x2d, ((0, 0), (0, 0), (0, Cpad - Wp * Cin))).astype(compute_dtype)

    bias_tiled = jnp.tile(bias, W).reshape(1, W * Cout)            # index w*Cout+co -> bias[co]

    kernel = functools.partial(_conv_bn_relu_kernel, H=H, KH=KH, relu=relu)

    flops = 2 * N * H * W * KH * KW * Cin * Cout
    bytes_accessed = (x2d.size * x2d.dtype.itemsize
                      + w_toep.size * w_toep.dtype.itemsize
                      + bias_tiled.size * 4
                      + N * H * W * Cout * 4)

    out = pl.pallas_call(
        kernel,
        out_shape=jax.ShapeDtypeStruct((N, H, W * Cout), jnp.float32),
        grid_spec=pltpu.PrefetchScalarGridSpec(
            num_scalar_prefetch=0,
            grid=(N,),
            in_specs=[
                pl.BlockSpec((1, Hp, Cpad), lambda n: (n, 0, 0)),
                pl.BlockSpec((KH, Cpad, W * Cout), lambda n: (0, 0, 0)),
                pl.BlockSpec((1, W * Cout), lambda n: (0, 0)),
            ],
            out_specs=pl.BlockSpec((1, H, W * Cout), lambda n: (n, 0, 0)),
        ),
        compiler_params=pltpu.CompilerParams(
            dimension_semantics=("parallel",)),   # batch axis -> shards across v7x's 2 TCs
        cost_estimate=pl.CostEstimate(
            flops=flops, transcendentals=0, bytes_accessed=bytes_accessed),
    )(x2d, w_toep, bias_tiled)

    # Unpack lane-dense (N, H, W*Cout) back to NHWC in the wrapper (layout glue only).
    return out.reshape(N, H, W, Cout)


def _reference(x_nhwc, w_hwio, gamma, beta, running_mean, running_var,
               *, eps=1e-5, relu=True, compute_dtype=jnp.bfloat16):
    # Same math, same bf16 input quantization, f32 accumulation.
    std = jnp.sqrt(running_var + eps)
    scale = gamma / std
    w_scaled = (w_hwio * scale[None, None, None, :]).astype(compute_dtype).astype(jnp.float32)
    bias = beta - running_mean * scale
    x_q = x_nhwc.astype(compute_dtype).astype(jnp.float32)
    y = jax.lax.conv_general_dilated(
        x_q, w_scaled, window_strides=(1, 1), padding="SAME",
        dimension_numbers=("NHWC", "HWIO", "NHWC"))
    y = y + bias
    if relu:
        y = jnp.maximum(y, 0.0)
    return y


if __name__ == "__main__":
    # Module config: conv_bn_relu(in_channels=4, out_channels=8, kernel_size=3)
    N, Cin, H, W = 2, 4, 16, 16
    Cout, K = 8, 3

    key = jax.random.PRNGKey(0)
    k_x, k_w, k_g, k_b, k_m, k_v = jax.random.split(key, 6)

    # PyTorch-style NCHW input, converted to NHWC for the kernel.
    x_nchw = jax.random.normal(k_x, (N, Cin, H, W), dtype=jnp.float32)
    x_nhwc = jnp.transpose(x_nchw, (0, 2, 3, 1))

    # Conv weight OIHW (Cout, Cin, KH, KW) -> HWIO.
    w_oihw = jax.random.normal(k_w, (Cout, Cin, K, K), dtype=jnp.float32) * 0.1
    w_hwio = jnp.transpose(w_oihw, (2, 3, 1, 0))

    # BatchNorm2d parameters / running stats.
    gamma = 1.0 + 0.1 * jax.random.normal(k_g, (Cout,), dtype=jnp.float32)
    beta = 0.1 * jax.random.normal(k_b, (Cout,), dtype=jnp.float32)
    running_mean = 0.1 * jax.random.normal(k_m, (Cout,), dtype=jnp.float32)
    running_var = jnp.abs(1.0 + 0.1 * jax.random.normal(k_v, (Cout,), dtype=jnp.float32))

    y = conv_bn_relu_pallas(x_nhwc, w_hwio, gamma, beta, running_mean, running_var)
    y = jax.block_until_ready(y)

    y_ref = _reference(x_nhwc, w_hwio, gamma, beta, running_mean, running_var)
    assert y.shape == (N, H, W, Cout)
    assert jnp.allclose(y, y_ref, atol=1e-3, rtol=1e-3), "mismatch vs reference conv"

    print("KERNEL_OK")
</pallas_src>

<mosaic_0001>
module attributes {stable_mosaic.version = 11 : i64} {
  func.func @_conv_bn_relu_kernel(%arg0: i32, %arg1: memref<1x18x128xbf16, #tpu.memory_space<vmem>>, %arg2: memref<3x128x128xbf16, #tpu.memory_space<vmem>>, %arg3: memref<1x128xf32, #tpu.memory_space<vmem>>, %arg4: memref<1x16x128xf32, #tpu.memory_space<vmem>>) attributes {dimension_semantics = [#tpu.dimension_semantics<parallel>], iteration_bounds = array<i64: 2>, scalar_prefetch = 0 : i64, scratch_operands = 0 : i64, tpu.core_type = #tpu.core_type<tc>, window_params = [{transform_indices = @transform_0, window_bounds = array<i64: 1, 18, 128>}, {pipeline_mode = #tpu.pipeline_mode<synchronous>, transform_indices = @transform_1, window_bounds = array<i64: 3, 128, 128>}, {pipeline_mode = #tpu.pipeline_mode<synchronous>, transform_indices = @transform_2, window_bounds = array<i64: 1, 128>}, {transform_indices = @transform_3, window_bounds = array<i64: 1, 16, 128>}]} {
    %cst = arith.constant 0.000000e+00 : f32
    %0 = vector.broadcast %cst : f32 to vector<16x128xf32>
    %c0 = arith.constant 0 : index
    %c0_0 = arith.constant 0 : index
    %c0_1 = arith.constant 0 : index
    %1 = vector.load %arg1[%c0, %c0_0, %c0_1] : memref<1x18x128xbf16, #tpu.memory_space<vmem>>, vector<1x16x128xbf16>
    %2 = vector.shape_cast %1 : vector<1x16x128xbf16> to vector<16x128xbf16>
    %c0_2 = arith.constant 0 : index
    %c0_3 = arith.constant 0 : index
    %c0_4 = arith.constant 0 : index
    %3 = vector.load %arg2[%c0_2, %c0_3, %c0_4] : memref<3x128x128xbf16, #tpu.memory_space<vmem>>, vector<1x128x128xbf16>
    %4 = vector.shape_cast %3 : vector<1x128x128xbf16> to vector<128x128xbf16>
    %cst_5 = arith.constant dense<0.000000e+00> : vector<16x128xf32>
    %5 = tpu.matmul %2, %4, %cst_5 {dimension_numbers = #tpu.dot_dimension_numbers<[1], [0], [0], [1], [0, 0, 1, 1], [], []>} : vector<16x128xbf16>, vector<128x128xbf16>, vector<16x128xf32> -> vector<16x128xf32>
    %6 = arith.addf %0, %5 : vector<16x128xf32>
    %c0_6 = arith.constant 0 : index
    %c1 = arith.constant 1 : index
    %c0_7 = arith.constant 0 : index
    %7 = vector.load %arg1[%c0_6, %c1, %c0_7] : memref<1x18x128xbf16, #tpu.memory_space<vmem>>, vector<1x16x128xbf16>
    %8 = vector.shape_cast %7 : vector<1x16x128xbf16> to vector<16x128xbf16>
    %c1_8 = arith.constant 1 : index
    %c0_9 = arith.constant 0 : index
    %c0_10 = arith.constant 0 : index
    %9 = vector.load %arg2[%c1_8, %c0_9, %c0_10] : memref<3x128x128xbf16, #tpu.memory_space<vmem>>, vector<1x128x128xbf16>
    %10 = vector.shape_cast %9 : vector<1x128x128xbf16> to vector<128x128xbf16>
    %cst_11 = arith.constant dense<0.000000e+00> : vector<16x128xf32>
    %11 = tpu.matmul %8, %10, %cst_11 {dimension_numbers = #tpu.dot_dimension_numbers<[1], [0], [0], [1], [0, 0, 1, 1], [], []>} : vector<16x128xbf16>, vector<128x128xbf16>, vector<16x128xf32> -> vector<16x128xf32>
    %12 = arith.addf %6, %11 : vector<16x128xf32>
    %c0_12 = arith.constant 0 : index
    %c2 = arith.constant 2 : index
    %c0_13 = arith.constant 0 : index
    %13 = vector.load %arg1[%c0_12, %c2, %c0_13] : memref<1x18x128xbf16, #tpu.memory_space<vmem>>, vector<1x16x128xbf16>
    %14 = vector.shape_cast %13 : vector<1x16x128xbf16> to vector<16x128xbf16>
    %c2_14 = arith.constant 2 : index
    %c0_15 = arith.constant 0 : index
    %c0_16 = arith.constant 0 : index
    %15 = vector.load %arg2[%c2_14, %c0_15, %c0_16] : memref<3x128x128xbf16, #tpu.memory_space<vmem>>, vector<1x128x128xbf16>
    %16 = vector.shape_cast %15 : vector<1x128x128xbf16> to vector<128x128xbf16>
    %cst_17 = arith.constant dense<0.000000e+00> : vector<16x128xf32>
    %17 = tpu.matmul %14, %16, %cst_17 {dimension_numbers = #tpu.dot_dimension_numbers<[1], [0], [0], [1], [0, 0, 1, 1], [], []>} : vector<16x128xbf16>, vector<128x128xbf16>, vector<16x128xf32> -> vector<16x128xf32>
    %18 = arith.addf %12, %17 : vector<16x128xf32>
    %c0_18 = arith.constant 0 : index
    %c0_19 = arith.constant 0 : index
    %19 = vector.load %arg3[%c0_18, %c0_19] : memref<1x128xf32, #tpu.memory_space<vmem>>, vector<1x128xf32>
    %20 = vector.broadcast %19 : vector<1x128xf32> to vector<16x128xf32>
    %21 = arith.addf %18, %20 : vector<16x128xf32>
    %cst_20 = arith.constant 0.000000e+00 : f32
    %22 = vector.broadcast %cst_20 : f32 to vector<16x128xf32>
    %23 = arith.maximumf %21, %22 : vector<16x128xf32>
    %c0_21 = arith.constant 0 : index
    %c0_22 = arith.constant 0 : index
    %c0_23 = arith.constant 0 : index
    %24 = vector.load %arg4[%c0_21, %c0_22, %c0_23] : memref<1x16x128xf32, #tpu.memory_space<vmem>>, vector<1x16x128xf32>
    %25 = vector.shape_cast %24 : vector<1x16x128xf32> to vector<16x128xf32>
    %26 = vector.shape_cast %23 : vector<16x128xf32> to vector<1x16x128xf32>
    tpu.vector_store %arg4[%c0_21, %c0_22, %c0_23], %26 {strides = array<i32>} : memref<1x16x128xf32, #tpu.memory_space<vmem>>, vector<1x16x128xf32>,
    return
  }
  func.func @transform_0(%arg0: i32) -> (i32, i32, i32) {
    %c0_i32 = arith.constant 0 : i32
    %c0_i32_0 = arith.constant 0 : i32
    %c0_i32_1 = arith.constant 0 : i32
    return %arg0, %c0_i32, %c0_i32_0 : i32, i32, i32
  }
  func.func @transform_1(%arg0: i32) -> (i32, i32, i32) {
    %c0_i32 = arith.constant 0 : i32
    %c0_i32_0 = arith.constant 0 : i32
    %c0_i32_1 = arith.constant 0 : i32
    %c0_i32_2 = arith.constant 0 : i32
    return %c0_i32, %c0_i32_0, %c0_i32_1 : i32, i32, i32
  }
  func.func @transform_2(%arg0: i32) -> (i32, i32) {
    %c0_i32 = arith.constant 0 : i32
    %c0_i32_0 = arith.constant 0 : i32
    %c0_i32_1 = arith.constant 0 : i32
    return %c0_i32, %c0_i32_0 : i32, i32
  }
  func.func @transform_3(%arg0: i32) -> (i32, i32, i32) {
    %c0_i32 = arith.constant 0 : i32
    %c0_i32_0 = arith.constant 0 : i32
    %c0_i32_1 = arith.constant 0 : i32
    return %arg0, %c0_i32, %c0_i32_0 : i32, i32, i32
  }
}

</mosaic_0001>

<llo_original>
// kernel: tpu_custom_call.1
$region0: #{tpu_custom_call.1}
  #allocation0 [shape = 'u32[]', space=smem, size = 0x4, offset = 0x4, fixed_abs, tag = 'smem constant byte address 0x4 - core index']
  #allocation1 [shape = 'u32[144,128]{1,0:T(1,128)}', space=vmem, size = 0x12000, scoped, tag = 'internal scratch']
  %s0 = inlined_call_operand.vmem [shape: bf16[2,18,128], index: 0, kind: input, shape index: {}]
  %s1 = inlined_call_operand.hbm [shape: bf16[3,128,128], index: 1, kind: input, shape index: {}]
  %s2 = inlined_call_operand.vmem [shape: f32[1,128], index: 2, kind: input, shape index: {}]
  %s3 = inlined_call_operand.hbm [shape: f32[2,16,128], index: 3, kind: output, shape index: {}]
  %s4 = sld [smem:[#allocation0]]
  $region49: #{tpu_custom_call.1} parent=0
    _
  %s6 = ssub.s32 1, %s4
  %s7 = scalar_select 0, %s6, %s4
  $region1: #{tpu_custom_call.1} parent=0
    #allocation2 [shape = 'u8[98304]{0}', space=vmem, size = 0x18000, scoped, tag = 'input window, operand 1, single buffered']
    #allocation3 [shape = 's32[2]{0}', space=sflag, size = 0x8, scoped, tag = 'scoped memory for tpu_custom_call.1']
    #allocation4 [shape = 's32[2]{0}', space=sflag, size = 0x8, scoped, tag = 'scoped memory for tpu_custom_call.1']
    #allocation5 [shape = 'u8[16384]{0}', space=vmem, size = 0x4000, scoped, tag = 'output window, operand 0']
    %8 = vsyncpa [#allocation3], 0
    %9 = vsyncpa [#allocation4], 0
    %s10 = scalar_lea.sflag [#allocation4], 1
    %11 = vsyncpa %s10, 0
    loop: start=0, step=1, limit=4
    $region2: #{tpu_custom_call.1} parent=1 // loop_pre_header
      _
    $region3: #{tpu_custom_call.1} parent=1 // loop_header
      %s13 = sphi 0, %s17
      %p14 = scmp.ge.s32.totalorder %s13, 4
      %s23 = sphi 0, %s25
      %s26 = sphi 0, %s23
      %s27 = sphi 0, %s26
      %s43 = sphi 0, %s27
      %s47 = sphi 0, %s47
      %s49 = sphi 0, %s47
      %s50 = sphi 0, %s49
      %s64 = sphi 0, %s50
      %s68 = sphi 0, %s68
      %s70 = sphi 0, %s68
      %s71 = sphi 0, %s70
      %s85 = sphi 0, %s71
      %s91 = sphi 0, %s93
      %s94 = sphi 0, %s91
      %s95 = sphi 0, %s94
      %s111 = sphi 0, %s95
    $region4: #{tpu_custom_call.1} parent=1 // loop_header_branch
      %16 = sbr.rel (%p14) target = $region8
    $region5: #{tpu_custom_call.1} parent=1 // loop_body
      %s18 = ssub.s32 %s13, 1
      %s19 = ssub.s32 %s13, 2
      %s20 = sadd.s32 %s13, 1
      %s21 = ssub.s32 %s13, %s20
      %p22 = scmp.eq.s32.totalorder %s21, 0
      %s24 = sadd.s32 %s23, 1
      %s25 = scalar_select %p22, %s23, %s24
      %p28 = pneg %p22
      %p29 = scmp.eq.s32.totalorder %s13, 1
      %p30 = por %p28, %p29
      %p31 = scmp.ne.s32.totalorder %s23, %s26
      %p32 = scmp.eq.s32.totalorder %s13, 0
      %p33 = por %p31, %p32
      %p34 = scmp.ne.s32.totalorder %s23, %s26
      %p35 = scmp.eq.s32.totalorder %s18, 1
      %p36 = por %p34, %p35
      %p37 = scmp.ne.s32.totalorder %s26, %s27
      %p38 = scmp.eq.s32.totalorder %s18, 0
      %p39 = por %p37, %p38
      %p40 = scmp.ne.s32.totalorder %s26, %s27
      %p41 = scmp.eq.s32.totalorder %s19, 1
      %p42 = por %p40, %p41
      %p44 = scmp.ne.s32.totalorder %s27, %s43
      %p45 = scmp.eq.s32.totalorder %s19, 0
      %p46 = por %p44, %p45
      %s48 = sadd.s32 %s47, 1
      %p51 = scmp.eq.s32.totalorder %s13, 1
      %p52 = scmp.ne.s32.totalorder %s47, %s49
      %p53 = scmp.eq.s32.totalorder %s13, 0
      %p54 = por %p52, %p53
      %p55 = scmp.ne.s32.totalorder %s47, %s49
      %p56 = scmp.eq.s32.totalorder %s18, 1
      %p57 = por %p55, %p56
      %p58 = scmp.ne.s32.totalorder %s49, %s50
      %p59 = scmp.eq.s32.totalorder %s18, 0
      %p60 = por %p58, %p59
      %p61 = scmp.ne.s32.totalorder %s49, %s50
      %p62 = scmp.eq.s32.totalorder %s19, 1
      %p63 = por %p61, %p62
      %p65 = scmp.ne.s32.totalorder %s50, %s64
      %p66 = scmp.eq.s32.totalorder %s19, 0
      %p67 = por %p65, %p66
      %s69 = sadd.s32 %s68, 1
      %p72 = scmp.eq.s32.totalorder %s13, 1
      %p73 = scmp.ne.s32.totalorder %s68, %s70
      %p74 = scmp.eq.s32.totalorder %s13, 0
      %p75 = por %p73, %p74
      %p76 = scmp.ne.s32.totalorder %s68, %s70
      %p77 = scmp.eq.s32.totalorder %s18, 1
      %p78 = por %p76, %p77
      %p79 = scmp.ne.s32.totalorder %s70, %s71
      %p80 = scmp.eq.s32.totalorder %s18, 0
      %p81 = por %p79, %p80
      %p82 = scmp.ne.s32.totalorder %s70, %s71
      %p83 = scmp.eq.s32.totalorder %s19, 1
      %p84 = por %p82, %p83
      %p86 = scmp.ne.s32.totalorder %s71, %s85
      %p87 = scmp.eq.s32.totalorder %s19, 0
      %p88 = por %p86, %p87
      %s89 = ssub.s32 %s13, %s20
      %p90 = scmp.eq.s32.totalorder %s89, 0
      %s92 = sadd.s32 %s91, 1
      %s93 = scalar_select %p90, %s91, %s92
      %p96 = pneg %p90
      %p97 = scmp.eq.s32.totalorder %s13, 1
      %p98 = por %p96, %p97
      %p99 = scmp.ne.s32.totalorder %s91, %s94
      %p100 = scmp.eq.s32.totalorder %s13, 0
      %p101 = por %p99, %p100
      %p102 = scmp.ne.s32.totalorder %s91, %s94
      %p103 = scmp.eq.s32.totalorder %s18, 1
      %p104 = por %p102, %p103
      %p105 = scmp.ne.s32.totalorder %s94, %s95
      %p106 = scmp.eq.s32.totalorder %s18, 0
      %p107 = por %p105, %p106
      %p108 = scmp.ne.s32.totalorder %s94, %s95
      %p109 = scmp.eq.s32.totalorder %s19, 1
      %p110 = por %p108, %p109
      %p112 = scmp.ne.s32.totalorder %s95, %s111
      %p113 = scmp.eq.s32.totalorder %s19, 0
      %p114 = por %p112, %p113
      %p115 = scmp.le.s32.totalorder 1, %s13
      %p116 = scmp.lt.s32.totalorder %s13, 3
      %p117 = pnand %p115, %p116
      %p118 = pneg %p117
      // Predicated region
      $region9: #{tpu_custom_call.1} parent=5 // pred_check
        _
      $region10: #{tpu_custom_call.1} parent=5 // pred_check_branch
        %120 = sbr.rel (%p117) target = $region12
      $region11: #{tpu_custom_call.1} parent=5 // pred_region
        %s121 = ssub.s32 %s13, 1
        // Predicated region
        $region13: #{tpu_custom_call.1} parent=11 // pred_check
          %p122 = pneg %p60
        $region14: #{tpu_custom_call.1} parent=11 // pred_check_branch
          %124 = sbr.rel (%p122) target = $region16
        $region15: #{tpu_custom_call.1} parent=11 // pred_region
          %s126 = ssub.s32 3072, 3072
          %127 = vsyncadd [#allocation3], %s126
          %s128 = sshll.u32 [#allocation2], 4
          %s129 = int_to_ptr.vmem [resolvable:$true] %s128
          %134 = dma.hbm_to_vmem [thread:$0]  %s1, 3072, %s129, [#allocation3], 64, 64, 4
        $region16: #{tpu_custom_call.1} parent=11 // pred_fallthru
          _
        // Predicated region
        $region17: #{tpu_custom_call.1} parent=11 // pred_check
          %p135 = pneg %p81
        $region18: #{tpu_custom_call.1} parent=11 // pred_check_branch
          %137 = sbr.rel (%p135) target = $region20
        $region19: #{tpu_custom_call.1} parent=11 // pred_region
          _
        $region20: #{tpu_custom_call.1} parent=11 // pred_fallthru
          _
      $region12: #{tpu_custom_call.1} parent=5 // pred_fallthru
        _
      %p138 = scmp.lt.s32.totalorder %s13, 2
      // Predicated region
      $region21: #{tpu_custom_call.1} parent=5 // pred_check
        %p139 = pneg %p138
      $region22: #{tpu_custom_call.1} parent=5 // pred_check_branch
        %141 = sbr.rel (%p139) target = $region24
      $region23: #{tpu_custom_call.1} parent=5 // pred_region
        // Predicated region
        $region25: #{tpu_custom_call.1} parent=23 // pred_check
          %p142 = pneg %p33
        $region26: #{tpu_custom_call.1} parent=23 // pred_check_branch
          %144 = sbr.rel (%p142) target = $region28
        $region27: #{tpu_custom_call.1} parent=23 // pred_region
          %p145 = scmp.lt.s32.totalorder %s13, 1
          %s146 = scalar_select %p145, %s13, 1
          %s147 = smul.addr %s146, 3
          %s148 = smul.addr %s147, 4
          %s149 = scalar_lea.vmem %s0, %s148
        $region28: #{tpu_custom_call.1} parent=23 // pred_fallthru
          _
      $region24: #{tpu_custom_call.1} parent=5 // pred_fallthru
        _
      %p150 = scmp.le.s32.totalorder 1, %s13
      %p151 = scmp.lt.s32.totalorder %s13, 3
      %p152 = pnand %p150, %p151
      %p153 = pneg %p152
      // Predicated region
      $region29: #{tpu_custom_call.1} parent=5 // pred_check
        _
      $region30: #{tpu_custom_call.1} parent=5 // pred_check_branch
        %155 = sbr.rel (%p152) target = $region32
      $region31: #{tpu_custom_call.1} parent=5 // pred_region
        %s156 = ssub.s32 %s13, 1
        // Predicated region
        $region33: #{tpu_custom_call.1} parent=31 // pred_check
          %p157 = pneg %p60
        $region34: #{tpu_custom_call.1} parent=31 // pred_check_branch
          %159 = sbr.rel (%p157) target = $region36
        $region35: #{tpu_custom_call.1} parent=31 // pred_region
          %160 = dma.done [#allocation3], 3072
        $region36: #{tpu_custom_call.1} parent=31 // pred_fallthru
          _
        %p161 = scmp.lt.s32.totalorder %s18, 1
        %s162 = scalar_select %p161, %s18, 1
        %s163 = smul.addr %s162, 3
        %s164 = smul.addr %s163, 4
        %s165 = scalar_lea.vmem %s0, %s164
        %p166 = pneg %p39
        %p167 = pneg %p36
        %p168 = pneg %p60
        %p169 = pneg %p57
        %p170 = pneg %p81
        %p171 = pneg %p78
        %p172 = pneg %p107
        %p173 = pneg %p104
        %s174 = sand.u32 %s94, 1
        %s175 = scalar_lea.sflag [#allocation4], %s174
        %s176 = sand.u32 %s94, 1
        %s177 = smul.addr %s176, 16
        %s178 = scalar_lea.vmem [#allocation5], %s177
        %p179 = scmp.lt.s32.totalorder %s18, 1
        %s180 = scalar_select %p179, %s18, 1
        %s181 = smul.addr %s180, 3
        %s182 = smul.addr %s181, 4
        %s183 = scalar_lea.vmem %s0, %s182
        %v185 = vld [vmem:[%s183] sm:$0xf]
        %v186 = vld [vmem:[%s183 + $0x4] sm:$0xf]
        %v187 = vld [vmem:[#allocation2] sm:$0xf]
        %v188 = vld [vmem:[#allocation2 + $0x4] sm:$0xf]
        %v189 = vld [vmem:[#allocation2 + $0x8] sm:$0xf]
        %v190 = vld [vmem:[#allocation2 + $0xc] sm:$0xf]
        %v191 = vld [vmem:[#allocation2 + $0x10] sm:$0xf]
        %v192 = vld [vmem:[#allocation2 + $0x14] sm:$0xf]
        %v193 = vld [vmem:[#allocation2 + $0x18] sm:$0xf]
        %v194 = vld [vmem:[#allocation2 + $0x1c] sm:$0xf]
        %v195 = vld [vmem:[#allocation2 + $0x20] sm:$0xf]
        %v196 = vld [vmem:[#allocation2 + $0x24] sm:$0xf]
        %v197 = vld [vmem:[#allocation2 + $0x28] sm:$0xf]
        %v198 = vld [vmem:[#allocation2 + $0x2c] sm:$0xf]
        %v199 = vld [vmem:[#allocation2 + $0x30] sm:$0xf]
        %v200 = vld [vmem:[#allocation2 + $0x34] sm:$0xf]
        %v201 = vld [vmem:[#allocation2 + $0x38] sm:$0xf]
        %v202 = vld [vmem:[#allocation2 + $0x3c] sm:$0xf]
        %v203 = vld [vmem:[%s183 + $0x8] sm:$0x1]
        %s204 = scalar_lea.vmem [#allocation2], 64
        %v205 = vld [vmem:[%s204] sm:$0xf]
        %v206 = vld [vmem:[%s204 + $0x4] sm:$0xf]
        %v207 = vld [vmem:[%s204 + $0x8] sm:$0xf]
        %v208 = vld [vmem:[%s204 + $0xc] sm:$0xf]
        %v209 = vld [vmem:[%s204 + $0x10] sm:$0xf]
        %v210 = vld [vmem:[%s204 + $0x14] sm:$0xf]
        %v211 = vld [vmem:[%s204 + $0x18] sm:$0xf]
        %v212 = vld [vmem:[%s204 + $0x1c] sm:$0xf]
        %v213 = vld [vmem:[%s204 + $0x20] sm:$0xf]
        %v214 = vld [vmem:[%s204 + $0x24] sm:$0xf]
        %v215 = vld [vmem:[%s204 + $0x28] sm:$0xf]
        %v216 = vld [vmem:[%s204 + $0x2c] sm:$0xf]
        %v217 = vld [vmem:[%s204 + $0x30] sm:$0xf]
        %v218 = vld [vmem:[%s204 + $0x34] sm:$0xf]
        %v219 = vld [vmem:[%s204 + $0x38] sm:$0xf]
        %v220 = vld [vmem:[%s204 + $0x3c] sm:$0xf]
        %v224 = vunpack.c.l.b16 %v185
        %v225 = vunpack.c.l.b16 %v186
        %v226 = vunpack.c.l.b16 %v203
        %v227 = vpack.c.b16 %v225, %v224
        %v228 = vpack.c.b16 %v226, %v226
        %vm229 = vsmask.f32 7424
        %v231 = vshrl.u32 %v227, 16
        %v233 = vshll.u32 %v227, 16
        %v235 = vrot.slane %v233, 1
        %v236 = vor.u32 %v231, %v235
        %v238 = vshll.u32 %v228, 16
        %v240 = vrot.slane %v238, 1
        %v241 = vsel %vm229, %v236, %v240
        %v259 = vunpack.c.l.b16 %v205
        %v260 = vunpack.c.l.b16 %v206
        %v261 = vunpack.c.l.b16 %v207
        %v262 = vunpack.c.l.b16 %v208
        %v263 = vunpack.c.l.b16 %v209
        %v264 = vunpack.c.l.b16 %v210
        %v265 = vunpack.c.l.b16 %v211
        %v266 = vunpack.c.l.b16 %v212
        %v267 = vunpack.c.l.b16 %v213
        %v268 = vunpack.c.l.b16 %v214
        %v269 = vunpack.c.l.b16 %v215
        %v270 = vunpack.c.l.b16 %v216
        %v271 = vunpack.c.l.b16 %v217
        %v272 = vunpack.c.l.b16 %v218
        %v273 = vunpack.c.l.b16 %v219
        %v274 = vunpack.c.l.b16 %v220
        %v275 = vpack.c.b16 %v260, %v259
        %v276 = vpack.c.b16 %v262, %v261
        %v277 = vpack.c.b16 %v264, %v263
        %v278 = vpack.c.b16 %v266, %v265
        %v279 = vpack.c.b16 %v268, %v267
        %v280 = vpack.c.b16 %v270, %v269
        %v281 = vpack.c.b16 %v272, %v271
        %v282 = vpack.c.b16 %v274, %v273
        %291 = vmatprep.subr.bf16.mxu0 0
        %292 = vmatpush1.bf16.msra.mxu0 %v275
        %293 = vmatprep.subr.bf16.mxu0 0
        %294 = vmatpush1.bf16.msra.mxu0 %v276
        %295 = vmatprep.subr.bf16.mxu0 0
        %296 = vmatpush1.bf16.msra.mxu0 %v277
        %297 = vmatprep.subr.bf16.mxu0 0
        %298 = vmatpush1.bf16.msra.mxu0 %v278
        %299 = vmatprep.subr.bf16.mxu0 0
        %300 = vmatpush1.bf16.msra.mxu0 %v279
        %301 = vmatprep.subr.bf16.mxu0 0
        %302 = vmatpush1.bf16.msra.mxu0 %v280
        %303 = vmatprep.subr.bf16.mxu0 0
        %304 = vmatpush1.bf16.msra.mxu0 %v281
        %305 = vmatprep.subr.bf16.mxu0 0
        %306 = vmatpush1.bf16.msra.mxu0 %v282
        %307 = vmatprep.subr.bf16.mxu0 0
        %308 = vmatpush1.bf16.msra.mxu0 0
        %309 = vmatprep.subr.bf16.mxu0 0
        %310 = vmatpush1.bf16.msra.mxu0 0
        %311 = vmatprep.subr.bf16.mxu0 0
        %312 = vmatpush1.bf16.msra.mxu0 0
        %313 = vmatprep.subr.bf16.mxu0 0
        %314 = vmatpush1.bf16.msra.mxu0 0
        %315 = vmatprep.subr.bf16.mxu0 0
        %316 = vmatpush1.bf16.msra.mxu0 0
        %317 = vmatprep.subr.bf16.mxu0 0
        %318 = vmatpush1.bf16.msra.mxu0 0
        %319 = vmatprep.subr.bf16.mxu0 0
        %320 = vmatpush1.bf16.msra.mxu0 0
        %321 = vmatprep.subr.bf16.mxu0 0
        %322 = vmatpush1.bf16.msra.mxu0 0
        %323 = vmatprep.mubr.bf16.mxu0 0
        %324 = vmatmul.mubr.bf16.gmra.mrb[0].mxu0 %v241
        %v325 = vpop.f32.mrb[0].mxu0
        %v326 = vadd.f32 0.0, %v325
        %v327 = vpop.f32.mrb[0].mxu0
        %v328 = vpop.f32.mrb[0].mxu0
        %v329 = vadd.f32 0.0, %v328
        %v330 = vpop.f32.mrb[0].mxu0
        %331 = vdwg.mxu0
        %v349 = vunpack.c.l.b16 %v187
        %v350 = vunpack.c.l.b16 %v188
        %v351 = vunpack.c.l.b16 %v189
        %v352 = vunpack.c.l.b16 %v190
        %v353 = vunpack.c.l.b16 %v191
        %v354 = vunpack.c.l.b16 %v192
        %v355 = vunpack.c.l.b16 %v193
        %v356 = vunpack.c.l.b16 %v194
        %v357 = vunpack.c.l.b16 %v195
        %v358 = vunpack.c.l.b16 %v196
        %v359 = vunpack.c.l.b16 %v197
        %v360 = vunpack.c.l.b16 %v198
        %v361 = vunpack.c.l.b16 %v199
        %v362 = vunpack.c.l.b16 %v200
        %v363 = vunpack.c.l.b16 %v201
        %v364 = vunpack.c.l.b16 %v202
        %v365 = vpack.c.b16 %v350, %v349
        %v366 = vpack.c.b16 %v352, %v351
        %v367 = vpack.c.b16 %v354, %v353
        %v368 = vpack.c.b16 %v356, %v355
        %v369 = vpack.c.b16 %v358, %v357
        %v370 = vpack.c.b16 %v360, %v359
        %v371 = vpack.c.b16 %v362, %v361
        %v372 = vpack.c.b16 %v364, %v363
        %381 = vmatprep.subr.bf16.mxu0 0
        %382 = vmatpush1.bf16.msra.mxu0 %v365
        %383 = vmatprep.subr.bf16.mxu0 0
        %384 = vmatpush1.bf16.msra.mxu0 %v366
        %385 = vmatprep.subr.bf16.mxu0 0
        %386 = vmatpush1.bf16.msra.mxu0 %v367
        %387 = vmatprep.subr.bf16.mxu0 0
        %388 = vmatpush1.bf16.msra.mxu0 %v368
        %389 = vmatprep.subr.bf16.mxu0 0
        %390 = vmatpush1.bf16.msra.mxu0 %v369
        %391 = vmatprep.subr.bf16.mxu0 0
        %392 = vmatpush1.bf16.msra.mxu0 %v370
        %393 = vmatprep.subr.bf16.mxu0 0
        %394 = vmatpush1.bf16.msra.mxu0 %v371
        %395 = vmatprep.subr.bf16.mxu0 0
        %396 = vmatpush1.bf16.msra.mxu0 %v372
        %397 = vmatprep.subr.bf16.mxu0 0
        %398 = vmatpush1.bf16.msra.mxu0 0
        %399 = vmatprep.subr.bf16.mxu0 0
        %400 = vmatpush1.bf16.msra.mxu0 0
        %401 = vmatprep.subr.bf16.mxu0 0
        %402 = vmatpush1.bf16.msra.mxu0 0
        %403 = vmatprep.subr.bf16.mxu0 0
        %404 = vmatpush1.bf16.msra.mxu0 0
        %405 = vmatprep.subr.bf16.mxu0 0
        %406 = vmatpush1.bf16.msra.mxu0 0
        %407 = vmatprep.subr.bf16.mxu0 0
        %408 = vmatpush1.bf16.msra.mxu0 0
        %409 = vmatprep.subr.bf16.mxu0 0
        %410 = vmatpush1.bf16.msra.mxu0 0
        %411 = vmatprep.subr.bf16.mxu0 0
        %412 = vmatpush1.bf16.msra.mxu0 0
        %413 = vmatprep.mubr.bf16.mxu0 0
        %414 = vmatmul.mubr.bf16.gmra.mrb[0].mxu0 %v227
        %v415 = vpop.f32.mrb[0].mxu0
        %v416 = vadd.f32 %v326, %v415
        %v417 = vpop.f32.mrb[0].mxu0
        %v418 = vpop.f32.mrb[0].mxu0
        %v419 = vadd.f32 %v329, %v418
        %v420 = vpop.f32.mrb[0].mxu0
        %421 = vdwg.mxu0
        %v422 = vld [vmem:[%s183] sm:$0xe]
        %s423 = scalar_lea.vmem [#allocation2], 128
        %v424 = vld [vmem:[%s423] sm:$0xf]
        %v425 = vld [vmem:[%s423 + $0x4] sm:$0xf]
        %v426 = vld [vmem:[%s423 + $0x8] sm:$0xf]
        %v427 = vld [vmem:[%s423 + $0xc] sm:$0xf]
        %v428 = vld [vmem:[%s423 + $0x10] sm:$0xf]
        %v429 = vld [vmem:[%s423 + $0x14] sm:$0xf]
        %v430 = vld [vmem:[%s423 + $0x18] sm:$0xf]
        %v431 = vld [vmem:[%s423 + $0x1c] sm:$0xf]
        %v432 = vld [vmem:[%s423 + $0x20] sm:$0xf]
        %v433 = vld [vmem:[%s423 + $0x24] sm:$0xf]
        %v434 = vld [vmem:[%s423 + $0x28] sm:$0xf]
        %v435 = vld [vmem:[%s423 + $0x2c] sm:$0xf]
        %v436 = vld [vmem:[%s423 + $0x30] sm:$0xf]
        %v437 = vld [vmem:[%s423 + $0x34] sm:$0xf]
        %v438 = vld [vmem:[%s423 + $0x38] sm:$0xf]
        %v439 = vld [vmem:[%s423 + $0x3c] sm:$0xf]
        %v441 = vunpack.c.l.b16 %v422
        %v442 = vpack.c.b16 %v225, %v441
        %vm443 = vcmask 1046528
        %v444 = vrot.slane %v442, 1
        %v445 = vrot.slane %v228, 1
        %v446 = vsel %vm443, %v444, %v445
        %v464 = vunpack.c.l.b16 %v424
        %v465 = vunpack.c.l.b16 %v425
        %v466 = vunpack.c.l.b16 %v426
        %v467 = vunpack.c.l.b16 %v427
        %v468 = vunpack.c.l.b16 %v428
        %v469 = vunpack.c.l.b16 %v429
        %v470 = vunpack.c.l.b16 %v430
        %v471 = vunpack.c.l.b16 %v431
        %v472 = vunpack.c.l.b16 %v432
        %v473 = vunpack.c.l.b16 %v433
        %v474 = vunpack.c.l.b16 %v434
        %v475 = vunpack.c.l.b16 %v435
        %v476 = vunpack.c.l.b16 %v436
        %v477 = vunpack.c.l.b16 %v437
        %v478 = vunpack.c.l.b16 %v438
        %v479 = vunpack.c.l.b16 %v439
        %v480 = vpack.c.b16 %v465, %v464
        %v481 = vpack.c.b16 %v467, %v466
        %v482 = vpack.c.b16 %v469, %v468
        %v483 = vpack.c.b16 %v471, %v470
        %v484 = vpack.c.b16 %v473, %v472
        %v485 = vpack.c.b16 %v475, %v474
        %v486 = vpack.c.b16 %v477, %v476
        %v487 = vpack.c.b16 %v479, %v478
        %496 = vmatprep.subr.bf16.mxu0 0
        %497 = vmatpush1.bf16.msra.mxu0 %v480
        %498 = vmatprep.subr.bf16.mxu0 0
        %499 = vmatpush1.bf16.msra.mxu0 %v481
        %500 = vmatprep.subr.bf16.mxu0 0
        %501 = vmatpush1.bf16.msra.mxu0 %v482
        %502 = vmatprep.subr.bf16.mxu0 0
        %503 = vmatpush1.bf16.msra.mxu0 %v483
        %504 = vmatprep.subr.bf16.mxu0 0
        %505 = vmatpush1.bf16.msra.mxu0 %v484
        %506 = vmatprep.subr.bf16.mxu0 0
        %507 = vmatpush1.bf16.msra.mxu0 %v485
        %508 = vmatprep.subr.bf16.mxu0 0
        %509 = vmatpush1.bf16.msra.mxu0 %v486
        %510 = vmatprep.subr.bf16.mxu0 0
        %511 = vmatpush1.bf16.msra.mxu0 %v487
        %512 = vmatprep.subr.bf16.mxu0 0
        %513 = vmatpush1.bf16.msra.mxu0 0
        %514 = vmatprep.subr.bf16.mxu0 0
        %515 = vmatpush1.bf16.msra.mxu0 0
        %516 = vmatprep.subr.bf16.mxu0 0
        %517 = vmatpush1.bf16.msra.mxu0 0
        %518 = vmatprep.subr.bf16.mxu0 0
        %519 = vmatpush1.bf16.msra.mxu0 0
        %520 = vmatprep.subr.bf16.mxu0 0
        %521 = vmatpush1.bf16.msra.mxu0 0
        %522 = vmatprep.subr.bf16.mxu0 0
        %523 = vmatpush1.bf16.msra.mxu0 0
        %524 = vmatprep.subr.bf16.mxu0 0
        %525 = vmatpush1.bf16.msra.mxu0 0
        %526 = vmatprep.subr.bf16.mxu0 0
        %527 = vmatpush1.bf16.msra.mxu0 0
        %528 = vmatprep.mubr.bf16.mxu0 0
        %529 = vmatmul.mubr.bf16.gmra.mrb[0].mxu0 %v446
        %v530 = vpop.f32.mrb[0].mxu0
        %v531 = vadd.f32 0.0, %v530
        %v532 = vpop.f32.mrb[0].mxu0
        %v533 = vpop.f32.mrb[0].mxu0
        %v534 = vadd.f32 0.0, %v533
        %v535 = vpop.f32.mrb[0].mxu0
        %536 = vdwg.mxu0
        %v537 = vadd.f32 %v416, %v531
        %v538 = vadd.f32 %v419, %v534
        %v539 = vld [vmem:[%s2] sm:$0x1]
        %v541 = vlaneseq
        %v542 = vshrl.u32 %v541, 7
        %v543 = vsub.s32 0, %v542
        %v544 = vrot.slane %v539, %v543
        %v546 = vadd.f32 %v537, %v544
        %v547 = vadd.f32 %v538, %v544
        %v548 = vmax.f32 %v546, 0.0
        %v549 = vmax.f32 %v547, 0.0
        %550 = vst [vmem:[%s178] sm:$0xff] %v548
        %551 = vst [vmem:[%s178 + $0x8] sm:$0xff] %v549
        %s552 = sand.u32 %s94, 1
        %s553 = scalar_lea.sflag [#allocation4], %s552
        %s554 = sand.u32 %s94, 1
        %s555 = smul.addr %s554, 16
        %s556 = scalar_lea.vmem [#allocation5], %s555
        // Predicated region
        $region37: #{tpu_custom_call.1} parent=31 // pred_check
          %p557 = pneg %p104
        $region38: #{tpu_custom_call.1} parent=31 // pred_check_branch
          %559 = sbr.rel (%p557) target = $region40
        $region39: #{tpu_custom_call.1} parent=31 // pred_region
          %s561 = ssub.s32 256, 256
          %562 = vsyncadd %s553, %s561
          %s563 = smul.addr %s18, 2
          %s564 = smul.addr %s563, 128
          %s565 = scalar_lea.hbm %s3, %s564
          %s566 = sshll.u32 %s556, 4
          %s567 = int_to_ptr.vmem [resolvable:$true] %s566
          %572 = dma.vmem_to_hbm [thread:$0]  %s567, 256, %s565, %s553, 128, 128, 8
        $region40: #{tpu_custom_call.1} parent=31 // pred_fallthru
          _
      $region32: #{tpu_custom_call.1} parent=5 // pred_fallthru
        _
      %p573 = scmp.le.s32.totalorder 2, %s13
      // Predicated region
      $region41: #{tpu_custom_call.1} parent=5 // pred_check
        %p574 = pneg %p573
      $region42: #{tpu_custom_call.1} parent=5 // pred_check_branch
        %576 = sbr.rel (%p574) target = $region44
      $region43: #{tpu_custom_call.1} parent=5 // pred_region
        %s577 = ssub.s32 %s13, 2
        // Predicated region
        $region45: #{tpu_custom_call.1} parent=43 // pred_check
          %p578 = pneg %p110
        $region46: #{tpu_custom_call.1} parent=43 // pred_check_branch
          %580 = sbr.rel (%p578) target = $region48
        $region47: #{tpu_custom_call.1} parent=43 // pred_region
          %s581 = sand.u32 %s95, 1
          %s582 = scalar_lea.sflag [#allocation4], %s581
          %s583 = sand.u32 %s95, 1
          %s584 = smul.addr %s583, 16
          %s585 = scalar_lea.vmem [#allocation5], %s584
          %586 = dma.done %s582, 256
        $region48: #{tpu_custom_call.1} parent=43 // pred_fallthru
          _
      $region44: #{tpu_custom_call.1} parent=5 // pred_fallthru
        _
    $region6: #{tpu_custom_call.1} parent=1 // loop_footer
      %s17 = sadd.s32 1, %s13
    $region7: #{tpu_custom_call.1} parent=1 // loop_footer_branch
      %12 = sbr.rel target = $region3
    $region8: #{tpu_custom_call.1} parent=1 // loop_exit
      _
    %587 = vsyncpa [#allocation3], 1
    %s588 = scalar_lea.sflag [#allocation3], 1
    %589 = vsyncpa %s588, 1
    %590 = vsyncpa [#allocation4], 1
    %s591 = scalar_lea.sflag [#allocation4], 1
    %592 = vsyncpa %s591, 1

</llo_original>
